<compile_context>
chip_gen: v5e
topology: v5e:2x2
jax: 0.10.0
libtpu: 0.0.40
codegen_flags: <defaults>
</compile_context>

<pallas_src>
import jax
import jax.numpy as jnp
from jax.experimental import pallas as pl
from jax.experimental.pallas import tpu as pltpu


def _round_up(n, m):
    return ((n + m - 1) // m) * m


# ----------------------------------------------------------------------------
# Kernel
# ----------------------------------------------------------------------------
def cvae_kernel(
    x_ref, c_ref, eps_ref,
    w1x_ref, w1c_ref, b1_ref,
    wmu_ref, bmu_ref, wlv_ref, blv_ref,
    w2z_ref, w2c_ref, b2_ref,
    w3_ref, b3_ref,
    recon_ref, mu_ref, logvar_ref,
):
    f32 = jnp.float32
    bf16 = jnp.bfloat16

    x = x_ref[...].astype(bf16)     # (bb, input_sz)
    c = c_ref[...].astype(f32)      # (bb, 1)
    eps = eps_ref[...].astype(f32)  # (bb, hidden_sz_2)

    # ---- encode: h1 = relu(cat(x, c) @ W1 + b1) -------------------------------
    # cat(x, c) @ W1  ==  x @ W1x  +  c * W1c_row   (W1c is a single row, VPU)
    h1 = jnp.dot(x, w1x_ref[...], preferred_element_type=f32)
    h1 = h1 + c * w1c_ref[...] + b1_ref[...]
    h1 = jnp.maximum(h1, 0.0).astype(bf16)

    mu = jnp.dot(h1, wmu_ref[...], preferred_element_type=f32) + bmu_ref[...]
    logvar = jnp.dot(h1, wlv_ref[...], preferred_element_type=f32) + blv_ref[...]

    # ---- reparametrize: z = mu + exp(0.5*logvar) * eps  (train branch always) --
    z = mu + jnp.exp(0.5 * logvar) * eps

    # ---- decode: sigmoid(relu(cat(z, c) @ W2 + b2) @ W3 + b3) ------------------
    h3 = jnp.dot(z.astype(bf16), w2z_ref[...], preferred_element_type=f32)
    h3 = h3 + c * w2c_ref[...] + b2_ref[...]
    h3 = jnp.maximum(h3, 0.0).astype(bf16)

    logits = jnp.dot(h3, w3_ref[...], preferred_element_type=f32) + b3_ref[...]
    recon = 0.5 * jnp.tanh(0.5 * logits) + 0.5   # sigmoid: single EUP tanh

    # unpadded, true-width stores -- nothing left for the wrapper to slice
    recon_ref[...] = recon.astype(recon_ref.dtype)
    mu_ref[...] = mu.astype(mu_ref.dtype)
    logvar_ref[...] = logvar.astype(logvar_ref.dtype)


# ----------------------------------------------------------------------------
# Wrapper helpers
# ----------------------------------------------------------------------------
def _pick_batch_block(batch, max_block=256, target_steps=4):
    """Fixed-size tile + cdiv grid; Pallas clips the ragged last block.

    Aims for >= target_steps grid steps (so both v7x TCs get work and DMAs
    pipeline against compute) while capping the tile so f32 activation blocks
    stay well inside v5e's scoped-VMEM default.
    """
    if batch <= 8:
        return batch
    bb = _round_up(pl.cdiv(batch, target_steps), 8)
    return max(8, min(bb, max_block))


def _vmem_limit_bytes(bb, input_sz, hidden_sz, hidden_sz_2, params):
    """Heuristic scoped-VMEM request: 2x-buffered I/O blocks + single-buffered
    weights + in-kernel temporaries, with 2x headroom.  Floor 16 MiB, cap 48 MiB
    (safe on every generation's physical VMEM)."""
    def buf(rows, cols, itemsize):
        return _round_up(max(rows, 1), 8) * _round_up(max(cols, 1), 128) * itemsize

    io = 2 * (buf(bb, input_sz, 4) * 2            # x, recon
              + buf(bb, 1, 4)                     # c
              + buf(bb, hidden_sz_2, 4) * 3)      # eps, mu, logvar
    wgt = sum(buf(p.shape[0], p.shape[1], p.dtype.itemsize) for p in params.values())
    tmp = (3 * buf(bb, hidden_sz, 4)              # h1/h3 f32 + bf16 copies
           + 3 * buf(bb, hidden_sz_2, 4)          # z and friends
           + 2 * buf(bb, input_sz, 4))            # logits / recon staging
    est = 2 * (io + wgt + tmp) + (4 << 20)
    return int(min(max(est, 16 << 20), 48 << 20))


# ----------------------------------------------------------------------------
# Wrapper
# ----------------------------------------------------------------------------
@jax.jit
def conditional_vae_forward(x, c, eps, params):
    batch, input_sz = x.shape
    hidden_sz = params["w1x"].shape[1]
    hidden_sz_2 = params["wmu"].shape[1]

    bb = _pick_batch_block(batch)
    grid = (pl.cdiv(batch, bb),)

    def row_spec(width):
        return pl.BlockSpec((bb, width), lambda i: (i, 0))

    def const_spec(a):
        # weights/biases: whole array resident in VMEM, never re-DMA'd;
        # single buffer (default double-buffering would just waste VMEM).
        return pl.BlockSpec(a.shape, lambda i: (0, 0),
                            pipeline_mode=pl.Buffered(1))

    args = (
        x, c, eps,
        params["w1x"], params["w1c"], params["b1"],
        params["wmu"], params["bmu"], params["wlv"], params["blv"],
        params["w2z"], params["w2c"], params["b2"],
        params["w3"], params["b3"],
    )
    in_specs = ([row_spec(input_sz), row_spec(1), row_spec(hidden_sz_2)]
                + [const_spec(a) for a in args[3:]])

    out_shapes = (
        jax.ShapeDtypeStruct((batch, input_sz), jnp.float32),     # recon
        jax.ShapeDtypeStruct((batch, hidden_sz_2), jnp.float32),  # mu
        jax.ShapeDtypeStruct((batch, hidden_sz_2), jnp.float32),  # logvar
    )
    out_specs = (row_spec(input_sz), row_spec(hidden_sz_2), row_spec(hidden_sz_2))

    recon, mu, logvar = pl.pallas_call(
        cvae_kernel,
        out_shape=out_shapes,
        grid=grid,
        in_specs=in_specs,
        out_specs=out_specs,
        compiler_params=pltpu.CompilerParams(
            dimension_semantics=("parallel",),   # megacore / v7x 2-TC sharding
            vmem_limit_bytes=_vmem_limit_bytes(
                bb, input_sz, hidden_sz, hidden_sz_2, params),
        ),
    )(*args)
    return recon, mu, logvar


# ----------------------------------------------------------------------------
# Parameter init (mimics nn.Linear U(-1/sqrt(fan_in), 1/sqrt(fan_in)))
# Weights stored pre-transposed (in, out) at natural widths; matmul weights in
# bf16 (f32 accumulation); the rank-1 "c" rows and biases stay f32.
# ----------------------------------------------------------------------------
def init_params(key, input_sz, hidden_sz, hidden_sz_2, weight_dtype=jnp.bfloat16):
    def linear(k, fan_in, fan_out):
        kw, kb = jax.random.split(k)
        bound = float(fan_in) ** -0.5
        w = jax.random.uniform(kw, (fan_in, fan_out), jnp.float32, -bound, bound)
        b = jax.random.uniform(kb, (1, fan_out), jnp.float32, -bound, bound)
        return w, b

    k1, k2, k3, k4, k5 = jax.random.split(key, 5)
    w1, b1 = linear(k1, input_sz + 1, hidden_sz)      # input_to_hidden
    wmu, bmu = linear(k2, hidden_sz, hidden_sz_2)     # h1_to_h2
    wlv, blv = linear(k3, hidden_sz, hidden_sz_2)     # h1_to_h2_2
    w2, b2 = linear(k4, hidden_sz_2 + 1, hidden_sz)   # h2_to_h1
    w3, b3 = linear(k5, hidden_sz, input_sz)          # hidden_to_input

    return {
        "w1x": w1[:input_sz, :].astype(weight_dtype),
        "w1c": w1[input_sz:, :],                      # (1, hidden) f32 row
        "b1": b1,
        "wmu": wmu.astype(weight_dtype), "bmu": bmu,
        "wlv": wlv.astype(weight_dtype), "blv": blv,
        "w2z": w2[:hidden_sz_2, :].astype(weight_dtype),
        "w2c": w2[hidden_sz_2:, :],                   # (1, hidden) f32 row
        "b2": b2,
        "w3": w3.astype(weight_dtype), "b3": b3,
    }


# ----------------------------------------------------------------------------
# Plain-JAX reference of the exact same math (bf16 matmul operands, f32 accum)
# ----------------------------------------------------------------------------
def reference_forward(x, c, eps, params):
    f32, bf16 = jnp.float32, jnp.bfloat16

    def mm(a, w):
        return jnp.dot(a.astype(bf16), w, preferred_element_type=f32)

    h1 = jnp.maximum(mm(x, params["w1x"]) + c * params["w1c"] + params["b1"], 0.0)
    mu = mm(h1, params["wmu"]) + params["bmu"]
    logvar = mm(h1, params["wlv"]) + params["blv"]
    z = mu + jnp.exp(0.5 * logvar) * eps
    h3 = jnp.maximum(mm(z, params["w2z"]) + c * params["w2c"] + params["b2"], 0.0)
    recon = jax.nn.sigmoid(mm(h3, params["w3"]) + params["b3"])
    return recon, mu, logvar


if __name__ == "__main__":
    input_sz, hidden_sz, hidden_sz_2 = 16, 32, 8
    batch = 20   # small, but exercises a multi-step grid with a ragged last tile

    key = jax.random.PRNGKey(0)
    kx, kc, keps, kp = jax.random.split(key, 4)

    x = jax.random.uniform(kx, (batch, input_sz), jnp.float32)        # "image" in [0,1)
    c = jax.random.normal(kc, (batch, 1), jnp.float32)                # conditioning scalar
    eps = jax.random.normal(keps, (batch, hidden_sz_2), jnp.float32)  # reparam noise
    params = init_params(kp, input_sz, hidden_sz, hidden_sz_2)

    recon, mu, logvar = conditional_vae_forward(x, c, eps, params)
    jax.block_until_ready((recon, mu, logvar))

    r_ref, mu_ref, lv_ref = reference_forward(x, c, eps, params)
    assert recon.shape == (batch, input_sz)
    assert mu.shape == (batch, hidden_sz_2)
    assert logvar.shape == (batch, hidden_sz_2)
    # Identical bf16 operands / f32 accumulation -> tight tolerance for mu/logvar.
    assert jnp.allclose(mu, mu_ref, atol=1e-3, rtol=1e-3)
    assert jnp.allclose(logvar, lv_ref, atol=1e-3, rtol=1e-3)
    # recon compares the kernel's EUP tanh-sigmoid against jax.nn.sigmoid.
    assert jnp.allclose(recon, r_ref, atol=2e-3, rtol=2e-3)

    print("KERNEL_OK")
</pallas_src>

<mosaic_0001>
module attributes {stable_mosaic.version = 11 : i64} {
  func.func @cvae_kernel(%arg0: i32, %arg1: memref<8x16xf32, #tpu.memory_space<vmem>>, %arg2: memref<8x1xf32, #tpu.memory_space<vmem>>, %arg3: memref<8x8xf32, #tpu.memory_space<vmem>>, %arg4: memref<16x32xbf16, #tpu.memory_space<vmem>>, %arg5: memref<1x32xf32, #tpu.memory_space<vmem>>, %arg6: memref<1x32xf32, #tpu.memory_space<vmem>>, %arg7: memref<32x8xbf16, #tpu.memory_space<vmem>>, %arg8: memref<1x8xf32, #tpu.memory_space<vmem>>, %arg9: memref<32x8xbf16, #tpu.memory_space<vmem>>, %arg10: memref<1x8xf32, #tpu.memory_space<vmem>>, %arg11: memref<8x32xbf16, #tpu.memory_space<vmem>>, %arg12: memref<1x32xf32, #tpu.memory_space<vmem>>, %arg13: memref<1x32xf32, #tpu.memory_space<vmem>>, %arg14: memref<32x16xbf16, #tpu.memory_space<vmem>>, %arg15: memref<1x16xf32, #tpu.memory_space<vmem>>, %arg16: memref<8x16xf32, #tpu.memory_space<vmem>>, %arg17: memref<8x8xf32, #tpu.memory_space<vmem>>, %arg18: memref<8x8xf32, #tpu.memory_space<vmem>>) attributes {dimension_semantics = [#tpu.dimension_semantics<parallel>], iteration_bounds = array<i64: 3>, scalar_prefetch = 0 : i64, scratch_operands = 0 : i64, tpu.core_type = #tpu.core_type<tc>, window_params = [{transform_indices = @transform_0, window_bounds = array<i64: 8, 16>}, {transform_indices = @transform_1, window_bounds = array<i64: 8, 1>}, {transform_indices = @transform_2, window_bounds = array<i64: 8, 8>}, {pipeline_mode = #tpu.pipeline_mode<synchronous>, transform_indices = @transform_3, window_bounds = array<i64: 16, 32>}, {pipeline_mode = #tpu.pipeline_mode<synchronous>, transform_indices = @transform_4, window_bounds = array<i64: 1, 32>}, {pipeline_mode = #tpu.pipeline_mode<synchronous>, transform_indices = @transform_5, window_bounds = array<i64: 1, 32>}, {pipeline_mode = #tpu.pipeline_mode<synchronous>, transform_indices = @transform_6, window_bounds = array<i64: 32, 8>}, {pipeline_mode = #tpu.pipeline_mode<synchronous>, transform_indices = @transform_7, window_bounds = array<i64: 1, 8>}, {pipeline_mode = #tpu.pipeline_mode<synchronous>, transform_indices = @transform_8, window_bounds = array<i64: 32, 8>}, {pipeline_mode = #tpu.pipeline_mode<synchronous>, transform_indices = @transform_9, window_bounds = array<i64: 1, 8>}, {pipeline_mode = #tpu.pipeline_mode<synchronous>, transform_indices = @transform_10, window_bounds = array<i64: 8, 32>}, {pipeline_mode = #tpu.pipeline_mode<synchronous>, transform_indices = @transform_11, window_bounds = array<i64: 1, 32>}, {pipeline_mode = #tpu.pipeline_mode<synchronous>, transform_indices = @transform_12, window_bounds = array<i64: 1, 32>}, {pipeline_mode = #tpu.pipeline_mode<synchronous>, transform_indices = @transform_13, window_bounds = array<i64: 32, 16>}, {pipeline_mode = #tpu.pipeline_mode<synchronous>, transform_indices = @transform_14, window_bounds = array<i64: 1, 16>}, {transform_indices = @transform_15, window_bounds = array<i64: 8, 16>}, {transform_indices = @transform_16, window_bounds = array<i64: 8, 8>}, {transform_indices = @transform_17, window_bounds = array<i64: 8, 8>}]} {
    %c0 = arith.constant 0 : index
    %c0_0 = arith.constant 0 : index
    %0 = vector.load %arg1[%c0, %c0_0] : memref<8x16xf32, #tpu.memory_space<vmem>>, vector<8x16xf32>
    %1 = arith.truncf %0 : vector<8x16xf32> to vector<8x16xbf16>
    %c0_1 = arith.constant 0 : index
    %c0_2 = arith.constant 0 : index
    %2 = vector.load %arg2[%c0_1, %c0_2] : memref<8x1xf32, #tpu.memory_space<vmem>>, vector<8x1xf32>
    %c0_3 = arith.constant 0 : index
    %c0_4 = arith.constant 0 : index
    %3 = vector.load %arg3[%c0_3, %c0_4] : memref<8x8xf32, #tpu.memory_space<vmem>>, vector<8x8xf32>
    %c0_5 = arith.constant 0 : index
    %c0_6 = arith.constant 0 : index
    %4 = vector.load %arg4[%c0_5, %c0_6] : memref<16x32xbf16, #tpu.memory_space<vmem>>, vector<16x32xbf16>
    %cst = arith.constant dense<0.000000e+00> : vector<8x32xf32>
    %5 = tpu.matmul %1, %4, %cst {dimension_numbers = #tpu.dot_dimension_numbers<[1], [0], [0], [1], [0, 0, 1, 1], [], []>} : vector<8x16xbf16>, vector<16x32xbf16>, vector<8x32xf32> -> vector<8x32xf32>
    %c0_7 = arith.constant 0 : index
    %c0_8 = arith.constant 0 : index
    %6 = vector.load %arg5[%c0_7, %c0_8] : memref<1x32xf32, #tpu.memory_space<vmem>>, vector<1x32xf32>
    %7 = vector.broadcast %2 : vector<8x1xf32> to vector<8x32xf32>
    %8 = vector.broadcast %6 : vector<1x32xf32> to vector<8x32xf32>
    %9 = arith.mulf %7, %8 : vector<8x32xf32>
    %10 = arith.addf %5, %9 : vector<8x32xf32>
    %c0_9 = arith.constant 0 : index
    %c0_10 = arith.constant 0 : index
    %11 = vector.load %arg6[%c0_9, %c0_10] : memref<1x32xf32, #tpu.memory_space<vmem>>, vector<1x32xf32>
    %12 = vector.broadcast %11 : vector<1x32xf32> to vector<8x32xf32>
    %13 = arith.addf %10, %12 : vector<8x32xf32>
    %cst_11 = arith.constant 0.000000e+00 : f32
    %14 = vector.broadcast %cst_11 : f32 to vector<8x32xf32>
    %15 = arith.maximumf %13, %14 : vector<8x32xf32>
    %16 = arith.truncf %15 : vector<8x32xf32> to vector<8x32xbf16>
    %c0_12 = arith.constant 0 : index
    %c0_13 = arith.constant 0 : index
    %17 = vector.load %arg7[%c0_12, %c0_13] : memref<32x8xbf16, #tpu.memory_space<vmem>>, vector<32x8xbf16>
    %cst_14 = arith.constant dense<0.000000e+00> : vector<8x8xf32>
    %18 = tpu.matmul %16, %17, %cst_14 {dimension_numbers = #tpu.dot_dimension_numbers<[1], [0], [0], [1], [0, 0, 1, 1], [], []>} : vector<8x32xbf16>, vector<32x8xbf16>, vector<8x8xf32> -> vector<8x8xf32>
    %c0_15 = arith.constant 0 : index
    %c0_16 = arith.constant 0 : index
    %19 = vector.load %arg8[%c0_15, %c0_16] : memref<1x8xf32, #tpu.memory_space<vmem>>, vector<1x8xf32>
    %20 = vector.broadcast %19 : vector<1x8xf32> to vector<8x8xf32>
    %21 = arith.addf %18, %20 : vector<8x8xf32>
    %c0_17 = arith.constant 0 : index
    %c0_18 = arith.constant 0 : index
    %22 = vector.load %arg9[%c0_17, %c0_18] : memref<32x8xbf16, #tpu.memory_space<vmem>>, vector<32x8xbf16>
    %cst_19 = arith.constant dense<0.000000e+00> : vector<8x8xf32>
    %23 = tpu.matmul %16, %22, %cst_19 {dimension_numbers = #tpu.dot_dimension_numbers<[1], [0], [0], [1], [0, 0, 1, 1], [], []>} : vector<8x32xbf16>, vector<32x8xbf16>, vector<8x8xf32> -> vector<8x8xf32>
    %c0_20 = arith.constant 0 : index
    %c0_21 = arith.constant 0 : index
    %24 = vector.load %arg10[%c0_20, %c0_21] : memref<1x8xf32, #tpu.memory_space<vmem>>, vector<1x8xf32>
    %25 = vector.broadcast %24 : vector<1x8xf32> to vector<8x8xf32>
    %26 = arith.addf %23, %25 : vector<8x8xf32>
    %cst_22 = arith.constant 5.000000e-01 : f32
    %27 = vector.broadcast %cst_22 : f32 to vector<8x8xf32>
    %28 = arith.mulf %27, %26 : vector<8x8xf32>
    %29 = math.exp %28 : vector<8x8xf32>
    %30 = arith.mulf %29, %3 : vector<8x8xf32>
    %31 = arith.addf %21, %30 : vector<8x8xf32>
    %32 = arith.truncf %31 : vector<8x8xf32> to vector<8x8xbf16>
    %c0_23 = arith.constant 0 : index
    %c0_24 = arith.constant 0 : index
    %33 = vector.load %arg11[%c0_23, %c0_24] : memref<8x32xbf16, #tpu.memory_space<vmem>>, vector<8x32xbf16>
    %cst_25 = arith.constant dense<0.000000e+00> : vector<8x32xf32>
    %34 = tpu.matmul %32, %33, %cst_25 {dimension_numbers = #tpu.dot_dimension_numbers<[1], [0], [0], [1], [0, 0, 1, 1], [], []>} : vector<8x8xbf16>, vector<8x32xbf16>, vector<8x32xf32> -> vector<8x32xf32>
    %c0_26 = arith.constant 0 : index
    %c0_27 = arith.constant 0 : index
    %35 = vector.load %arg12[%c0_26, %c0_27] : memref<1x32xf32, #tpu.memory_space<vmem>>, vector<1x32xf32>
    %36 = vector.broadcast %2 : vector<8x1xf32> to vector<8x32xf32>
    %37 = vector.broadcast %35 : vector<1x32xf32> to vector<8x32xf32>
    %38 = arith.mulf %36, %37 : vector<8x32xf32>
    %39 = arith.addf %34, %38 : vector<8x32xf32>
    %c0_28 = arith.constant 0 : index
    %c0_29 = arith.constant 0 : index
    %40 = vector.load %arg13[%c0_28, %c0_29] : memref<1x32xf32, #tpu.memory_space<vmem>>, vector<1x32xf32>
    %41 = vector.broadcast %40 : vector<1x32xf32> to vector<8x32xf32>
    %42 = arith.addf %39, %41 : vector<8x32xf32>
    %cst_30 = arith.constant 0.000000e+00 : f32
    %43 = vector.broadcast %cst_30 : f32 to vector<8x32xf32>
    %44 = arith.maximumf %42, %43 : vector<8x32xf32>
    %45 = arith.truncf %44 : vector<8x32xf32> to vector<8x32xbf16>
    %c0_31 = arith.constant 0 : index
    %c0_32 = arith.constant 0 : index
    %46 = vector.load %arg14[%c0_31, %c0_32] : memref<32x16xbf16, #tpu.memory_space<vmem>>, vector<32x16xbf16>
    %cst_33 = arith.constant dense<0.000000e+00> : vector<8x16xf32>
    %47 = tpu.matmul %45, %46, %cst_33 {dimension_numbers = #tpu.dot_dimension_numbers<[1], [0], [0], [1], [0, 0, 1, 1], [], []>} : vector<8x32xbf16>, vector<32x16xbf16>, vector<8x16xf32> -> vector<8x16xf32>
    %c0_34 = arith.constant 0 : index
    %c0_35 = arith.constant 0 : index
    %48 = vector.load %arg15[%c0_34, %c0_35] : memref<1x16xf32, #tpu.memory_space<vmem>>, vector<1x16xf32>
    %49 = vector.broadcast %48 : vector<1x16xf32> to vector<8x16xf32>
    %50 = arith.addf %47, %49 : vector<8x16xf32>
    %cst_36 = arith.constant 5.000000e-01 : f32
    %51 = vector.broadcast %cst_36 : f32 to vector<8x16xf32>
    %52 = arith.mulf %51, %50 : vector<8x16xf32>
    %53 = math.tanh %52 : vector<8x16xf32>
    %cst_37 = arith.constant 5.000000e-01 : f32
    %54 = vector.broadcast %cst_37 : f32 to vector<8x16xf32>
    %55 = arith.mulf %54, %53 : vector<8x16xf32>
    %cst_38 = arith.constant 5.000000e-01 : f32
    %56 = vector.broadcast %cst_38 : f32 to vector<8x16xf32>
    %57 = arith.addf %55, %56 : vector<8x16xf32>
    %c0_39 = arith.constant 0 : index
    %c0_40 = arith.constant 0 : index
    %58 = vector.load %arg16[%c0_39, %c0_40] : memref<8x16xf32, #tpu.memory_space<vmem>>, vector<8x16xf32>
    tpu.vector_store %arg16[%c0_39, %c0_40], %57 {strides = array<i32>} : memref<8x16xf32, #tpu.memory_space<vmem>>, vector<8x16xf32>,
    %c0_41 = arith.constant 0 : index
    %c0_42 = arith.constant 0 : index
    %59 = vector.load %arg17[%c0_41, %c0_42] : memref<8x8xf32, #tpu.memory_space<vmem>>, vector<8x8xf32>
    tpu.vector_store %arg17[%c0_41, %c0_42], %21 {strides = array<i32>} : memref<8x8xf32, #tpu.memory_space<vmem>>, vector<8x8xf32>,
    %c0_43 = arith.constant 0 : index
    %c0_44 = arith.constant 0 : index
    %60 = vector.load %arg18[%c0_43, %c0_44] : memref<8x8xf32, #tpu.memory_space<vmem>>, vector<8x8xf32>
    tpu.vector_store %arg18[%c0_43, %c0_44], %26 {strides = array<i32>} : memref<8x8xf32, #tpu.memory_space<vmem>>, vector<8x8xf32>,
    return
  }
  func.func @transform_0(%arg0: i32) -> (i32, i32) {
    %c0_i32 = arith.constant 0 : i32
    %c0_i32_0 = arith.constant 0 : i32
    return %arg0, %c0_i32 : i32, i32
  }
  func.func @transform_1(%arg0: i32) -> (i32, i32) {
    %c0_i32 = arith.constant 0 : i32
    %c0_i32_0 = arith.constant 0 : i32
    return %arg0, %c0_i32 : i32, i32
  }
  func.func @transform_2(%arg0: i32) -> (i32, i32) {
    %c0_i32 = arith.constant 0 : i32
    %c0_i32_0 = arith.constant 0 : i32
    return %arg0, %c0_i32 : i32, i32
  }
  func.func @transform_3(%arg0: i32) -> (i32, i32) {
    %c0_i32 = arith.constant 0 : i32
    %c0_i32_0 = arith.constant 0 : i32
    %c0_i32_1 = arith.constant 0 : i32
    return %c0_i32, %c0_i32_0 : i32, i32
  }
  func.func @transform_4(%arg0: i32) -> (i32, i32) {
    %c0_i32 = arith.constant 0 : i32
    %c0_i32_0 = arith.constant 0 : i32
    %c0_i32_1 = arith.constant 0 : i32
    return %c0_i32, %c0_i32_0 : i32, i32
  }
  func.func @transform_5(%arg0: i32) -> (i32, i32) {
    %c0_i32 = arith.constant 0 : i32
    %c0_i32_0 = arith.constant 0 : i32
    %c0_i32_1 = arith.constant 0 : i32
    return %c0_i32, %c0_i32_0 : i32, i32
  }
  func.func @transform_6(%arg0: i32) -> (i32, i32) {
    %c0_i32 = arith.constant 0 : i32
    %c0_i32_0 = arith.constant 0 : i32
    %c0_i32_1 = arith.constant 0 : i32
    return %c0_i32, %c0_i32_0 : i32, i32
  }
  func.func @transform_7(%arg0: i32) -> (i32, i32) {
    %c0_i32 = arith.constant 0 : i32
    %c0_i32_0 = arith.constant 0 : i32
    %c0_i32_1 = arith.constant 0 : i32
    return %c0_i32, %c0_i32_0 : i32, i32
  }
  func.func @transform_8(%arg0: i32) -> (i32, i32) {
    %c0_i32 = arith.constant 0 : i32
    %c0_i32_0 = arith.constant 0 : i32
    %c0_i32_1 = arith.constant 0 : i32
    return %c0_i32, %c0_i32_0 : i32, i32
  }
  func.func @transform_9(%arg0: i32) -> (i32, i32) {
    %c0_i32 = arith.constant 0 : i32
    %c0_i32_0 = arith.constant 0 : i32
    %c0_i32_1 = arith.constant 0 : i32
    return %c0_i32, %c0_i32_0 : i32, i32
  }
  func.func @transform_10(%arg0: i32) -> (i32, i32) {
    %c0_i32 = arith.constant 0 : i32
    %c0_i32_0 = arith.constant 0 : i32
    %c0_i32_1 = arith.constant 0 : i32
    return %c0_i32, %c0_i32_0 : i32, i32
  }
  func.func @transform_11(%arg0: i32) -> (i32, i32) {
    %c0_i32 = arith.constant 0 : i32
    %c0_i32_0 = arith.constant 0 : i32
    %c0_i32_1 = arith.constant 0 : i32
    return %c0_i32, %c0_i32_0 : i32, i32
  }
  func.func @transform_12(%arg0: i32) -> (i32, i32) {
    %c0_i32 = arith.constant 0 : i32
    %c0_i32_0 = arith.constant 0 : i32
    %c0_i32_1 = arith.constant 0 : i32
    return %c0_i32, %c0_i32_0 : i32, i32
  }
  func.func @transform_13(%arg0: i32) -> (i32, i32) {
    %c0_i32 = arith.constant 0 : i32
    %c0_i32_0 = arith.constant 0 : i32
    %c0_i32_1 = arith.constant 0 : i32
    return %c0_i32, %c0_i32_0 : i32, i32
  }
  func.func @transform_14(%arg0: i32) -> (i32, i32) {
    %c0_i32 = arith.constant 0 : i32
    %c0_i32_0 = arith.constant 0 : i32
    %c0_i32_1 = arith.constant 0 : i32
    return %c0_i32, %c0_i32_0 : i32, i32
  }
  func.func @transform_15(%arg0: i32) -> (i32, i32) {
    %c0_i32 = arith.constant 0 : i32
    %c0_i32_0 = arith.constant 0 : i32
    return %arg0, %c0_i32 : i32, i32
  }
  func.func @transform_16(%arg0: i32) -> (i32, i32) {
    %c0_i32 = arith.constant 0 : i32
    %c0_i32_0 = arith.constant 0 : i32
    return %arg0, %c0_i32 : i32, i32
  }
  func.func @transform_17(%arg0: i32) -> (i32, i32) {
    %c0_i32 = arith.constant 0 : i32
    %c0_i32_0 = arith.constant 0 : i32
    return %arg0, %c0_i32 : i32, i32
  }
}

</mosaic_0001>

<llo_original>
// kernel: conditional_vae_forward.1
$region0: #{conditional_vae_forward.1}
  #allocation0 [shape = 'u32[]', space=smem, size = 0x4, offset = 0x4, fixed_abs, tag = 'smem constant byte address 0x4 - core index']
  #allocation1 [shape = 'u32[72,128]{1,0:T(1,128)}', space=vmem, size = 0x9000, scoped, tag = 'internal scratch']
  %s0 = inlined_call_operand.vmem [shape: f32[20,16], index: 0, kind: input, shape index: {}]
  %s1 = inlined_call_operand.vmem [shape: f32[20,1], index: 1, kind: input, shape index: {}]
  %s2 = inlined_call_operand.vmem [shape: f32[20,8], index: 2, kind: input, shape index: {}]
  %s3 = inlined_call_operand.vmem [shape: bf16[16,32], index: 3, kind: input, shape index: {}]
  %s4 = inlined_call_operand.vmem [shape: f32[1,32], index: 4, kind: input, shape index: {}]
  %s5 = inlined_call_operand.vmem [shape: f32[1,32], index: 5, kind: input, shape index: {}]
  %s6 = inlined_call_operand.vmem [shape: bf16[32,8], index: 6, kind: input, shape index: {}]
  %s7 = inlined_call_operand.vmem [shape: f32[1,8], index: 7, kind: input, shape index: {}]
  %s8 = inlined_call_operand.vmem [shape: bf16[32,8], index: 8, kind: input, shape index: {}]
  %s9 = inlined_call_operand.vmem [shape: f32[1,8], index: 9, kind: input, shape index: {}]
  %s10 = inlined_call_operand.vmem [shape: bf16[8,32], index: 10, kind: input, shape index: {}]
  %s11 = inlined_call_operand.vmem [shape: f32[1,32], index: 11, kind: input, shape index: {}]
  %s12 = inlined_call_operand.vmem [shape: f32[1,32], index: 12, kind: input, shape index: {}]
  %s13 = inlined_call_operand.vmem [shape: bf16[32,16], index: 13, kind: input, shape index: {}]
  %s14 = inlined_call_operand.vmem [shape: f32[1,16], index: 14, kind: input, shape index: {}]
  %s15 = inlined_call_operand.vmem [shape: f32[20,16], index: 15, kind: output, shape index: {0}]
  %s16 = inlined_call_operand.vmem [shape: f32[20,8], index: 16, kind: output, shape index: {1}]
  %s17 = inlined_call_operand.vmem [shape: f32[20,8], index: 17, kind: output, shape index: {2}]
  %18 = xla_tuple %s15, %s16, %s17
  %s19 = sld [smem:[#allocation0]]
  $region109: #{conditional_vae_forward.1} parent=0
    _
  %s21 = ssub.s32 1, %s19
  %s22 = scalar_select 0, %s21, %s19
  loop: start=0, step=1, limit=5
  $region2: #{conditional_vae_forward.1} parent=0 // loop_pre_header
    _
  $region3: #{conditional_vae_forward.1} parent=0 // loop_header
    %s24 = sphi 0, %s28
    %p25 = scmp.ge.s32.totalorder %s24, 5
    %s34 = sphi 0, %s36
    %s37 = sphi 0, %s34
    %s38 = sphi 0, %s37
    %s54 = sphi 0, %s38
    %s60 = sphi 0, %s62
    %s63 = sphi 0, %s60
    %s64 = sphi 0, %s63
    %s80 = sphi 0, %s64
    %s86 = sphi 0, %s88
    %s89 = sphi 0, %s86
    %s90 = sphi 0, %s89
    %s106 = sphi 0, %s90
    %s110 = sphi 0, %s110
    %s112 = sphi 0, %s110
    %s113 = sphi 0, %s112
    %s127 = sphi 0, %s113
    %s131 = sphi 0, %s131
    %s133 = sphi 0, %s131
    %s134 = sphi 0, %s133
    %s148 = sphi 0, %s134
    %s152 = sphi 0, %s152
    %s154 = sphi 0, %s152
    %s155 = sphi 0, %s154
    %s169 = sphi 0, %s155
    %s173 = sphi 0, %s173
    %s175 = sphi 0, %s173
    %s176 = sphi 0, %s175
    %s190 = sphi 0, %s176
    %s194 = sphi 0, %s194
    %s196 = sphi 0, %s194
    %s197 = sphi 0, %s196
    %s211 = sphi 0, %s197
    %s215 = sphi 0, %s215
    %s217 = sphi 0, %s215
    %s218 = sphi 0, %s217
    %s232 = sphi 0, %s218
    %s236 = sphi 0, %s236
    %s238 = sphi 0, %s236
    %s239 = sphi 0, %s238
    %s253 = sphi 0, %s239
    %s257 = sphi 0, %s257
    %s259 = sphi 0, %s257
    %s260 = sphi 0, %s259
    %s274 = sphi 0, %s260
    %s278 = sphi 0, %s278
    %s280 = sphi 0, %s278
    %s281 = sphi 0, %s280
    %s295 = sphi 0, %s281
    %s299 = sphi 0, %s299
    %s301 = sphi 0, %s299
    %s302 = sphi 0, %s301
    %s316 = sphi 0, %s302
    %s320 = sphi 0, %s320
    %s322 = sphi 0, %s320
    %s323 = sphi 0, %s322
    %s337 = sphi 0, %s323
    %s341 = sphi 0, %s341
    %s343 = sphi 0, %s341
    %s344 = sphi 0, %s343
    %s358 = sphi 0, %s344
    %s364 = sphi 0, %s366
    %s367 = sphi 0, %s364
    %s368 = sphi 0, %s367
    %s384 = sphi 0, %s368
    %s390 = sphi 0, %s392
    %s393 = sphi 0, %s390
    %s394 = sphi 0, %s393
    %s410 = sphi 0, %s394
    %s416 = sphi 0, %s418
    %s419 = sphi 0, %s416
    %s420 = sphi 0, %s419
    %s436 = sphi 0, %s420
  $region4: #{conditional_vae_forward.1} parent=0 // loop_header_branch
    %27 = sbr.rel (%p25) target = $region8
  $region5: #{conditional_vae_forward.1} parent=0 // loop_body
    %s29 = ssub.s32 %s24, 1
    %s30 = ssub.s32 %s24, 2
    %s31 = sadd.s32 %s24, 1
    %s32 = ssub.s32 %s24, %s31
    %p33 = scmp.eq.s32.totalorder %s32, 0
    %s35 = sadd.s32 %s34, 1
    %s36 = scalar_select %p33, %s34, %s35
    %p39 = pneg %p33
    %p40 = scmp.eq.s32.totalorder %s24, 2
    %p41 = por %p39, %p40
    %p42 = scmp.ne.s32.totalorder %s34, %s37
    %p43 = scmp.eq.s32.totalorder %s24, 0
    %p44 = por %p42, %p43
    %p45 = scmp.ne.s32.totalorder %s34, %s37
    %p46 = scmp.eq.s32.totalorder %s29, 2
    %p47 = por %p45, %p46
    %p48 = scmp.ne.s32.totalorder %s37, %s38
    %p49 = scmp.eq.s32.totalorder %s29, 0
    %p50 = por %p48, %p49
    %p51 = scmp.ne.s32.totalorder %s37, %s38
    %p52 = scmp.eq.s32.totalorder %s30, 2
    %p53 = por %p51, %p52
    %p55 = scmp.ne.s32.totalorder %s38, %s54
    %p56 = scmp.eq.s32.totalorder %s30, 0
    %p57 = por %p55, %p56
    %s58 = ssub.s32 %s24, %s31
    %p59 = scmp.eq.s32.totalorder %s58, 0
    %s61 = sadd.s32 %s60, 1
    %s62 = scalar_select %p59, %s60, %s61
    %p65 = pneg %p59
    %p66 = scmp.eq.s32.totalorder %s24, 2
    %p67 = por %p65, %p66
    %p68 = scmp.ne.s32.totalorder %s60, %s63
    %p69 = scmp.eq.s32.totalorder %s24, 0
    %p70 = por %p68, %p69
    %p71 = scmp.ne.s32.totalorder %s60, %s63
    %p72 = scmp.eq.s32.totalorder %s29, 2
    %p73 = por %p71, %p72
    %p74 = scmp.ne.s32.totalorder %s63, %s64
    %p75 = scmp.eq.s32.totalorder %s29, 0
    %p76 = por %p74, %p75
    %p77 = scmp.ne.s32.totalorder %s63, %s64
    %p78 = scmp.eq.s32.totalorder %s30, 2
    %p79 = por %p77, %p78
    %p81 = scmp.ne.s32.totalorder %s64, %s80
    %p82 = scmp.eq.s32.totalorder %s30, 0
    %p83 = por %p81, %p82
    %s84 = ssub.s32 %s24, %s31
    %p85 = scmp.eq.s32.totalorder %s84, 0
    %s87 = sadd.s32 %s86, 1
    %s88 = scalar_select %p85, %s86, %s87
    %p91 = pneg %p85
    %p92 = scmp.eq.s32.totalorder %s24, 2
    %p93 = por %p91, %p92
    %p94 = scmp.ne.s32.totalorder %s86, %s89
    %p95 = scmp.eq.s32.totalorder %s24, 0
    %p96 = por %p94, %p95
    %p97 = scmp.ne.s32.totalorder %s86, %s89
    %p98 = scmp.eq.s32.totalorder %s29, 2
    %p99 = por %p97, %p98
    %p100 = scmp.ne.s32.totalorder %s89, %s90
    %p101 = scmp.eq.s32.totalorder %s29, 0
    %p102 = por %p100, %p101
    %p103 = scmp.ne.s32.totalorder %s89, %s90
    %p104 = scmp.eq.s32.totalorder %s30, 2
    %p105 = por %p103, %p104
    %p107 = scmp.ne.s32.totalorder %s90, %s106
    %p108 = scmp.eq.s32.totalorder %s30, 0
    %p109 = por %p107, %p108
    %s111 = sadd.s32 %s110, 1
    %p114 = scmp.eq.s32.totalorder %s24, 2
    %p115 = scmp.ne.s32.totalorder %s110, %s112
    %p116 = scmp.eq.s32.totalorder %s24, 0
    %p117 = por %p115, %p116
    %p118 = scmp.ne.s32.totalorder %s110, %s112
    %p119 = scmp.eq.s32.totalorder %s29, 2
    %p120 = por %p118, %p119
    %p121 = scmp.ne.s32.totalorder %s112, %s113
    %p122 = scmp.eq.s32.totalorder %s29, 0
    %p123 = por %p121, %p122
    %p124 = scmp.ne.s32.totalorder %s112, %s113
    %p125 = scmp.eq.s32.totalorder %s30, 2
    %p126 = por %p124, %p125
    %p128 = scmp.ne.s32.totalorder %s113, %s127
    %p129 = scmp.eq.s32.totalorder %s30, 0
    %p130 = por %p128, %p129
    %s132 = sadd.s32 %s131, 1
    %p135 = scmp.eq.s32.totalorder %s24, 2
    %p136 = scmp.ne.s32.totalorder %s131, %s133
    %p137 = scmp.eq.s32.totalorder %s24, 0
    %p138 = por %p136, %p137
    %p139 = scmp.ne.s32.totalorder %s131, %s133
    %p140 = scmp.eq.s32.totalorder %s29, 2
    %p141 = por %p139, %p140
    %p142 = scmp.ne.s32.totalorder %s133, %s134
    %p143 = scmp.eq.s32.totalorder %s29, 0
    %p144 = por %p142, %p143
    %p145 = scmp.ne.s32.totalorder %s133, %s134
    %p146 = scmp.eq.s32.totalorder %s30, 2
    %p147 = por %p145, %p146
    %p149 = scmp.ne.s32.totalorder %s134, %s148
    %p150 = scmp.eq.s32.totalorder %s30, 0
    %p151 = por %p149, %p150
    %s153 = sadd.s32 %s152, 1
    %p156 = scmp.eq.s32.totalorder %s24, 2
    %p157 = scmp.ne.s32.totalorder %s152, %s154
    %p158 = scmp.eq.s32.totalorder %s24, 0
    %p159 = por %p157, %p158
    %p160 = scmp.ne.s32.totalorder %s152, %s154
    %p161 = scmp.eq.s32.totalorder %s29, 2
    %p162 = por %p160, %p161
    %p163 = scmp.ne.s32.totalorder %s154, %s155
    %p164 = scmp.eq.s32.totalorder %s29, 0
    %p165 = por %p163, %p164
    %p166 = scmp.ne.s32.totalorder %s154, %s155
    %p167 = scmp.eq.s32.totalorder %s30, 2
    %p168 = por %p166, %p167
    %p170 = scmp.ne.s32.totalorder %s155, %s169
    %p171 = scmp.eq.s32.totalorder %s30, 0
    %p172 = por %p170, %p171
    %s174 = sadd.s32 %s173, 1
    %p177 = scmp.eq.s32.totalorder %s24, 2
    %p178 = scmp.ne.s32.totalorder %s173, %s175
    %p179 = scmp.eq.s32.totalorder %s24, 0
    %p180 = por %p178, %p179
    %p181 = scmp.ne.s32.totalorder %s173, %s175
    %p182 = scmp.eq.s32.totalorder %s29, 2
    %p183 = por %p181, %p182
    %p184 = scmp.ne.s32.totalorder %s175, %s176
    %p185 = scmp.eq.s32.totalorder %s29, 0
    %p186 = por %p184, %p185
    %p187 = scmp.ne.s32.totalorder %s175, %s176
    %p188 = scmp.eq.s32.totalorder %s30, 2
    %p189 = por %p187, %p188
    %p191 = scmp.ne.s32.totalorder %s176, %s190
    %p192 = scmp.eq.s32.totalorder %s30, 0
    %p193 = por %p191, %p192
    %s195 = sadd.s32 %s194, 1
    %p198 = scmp.eq.s32.totalorder %s24, 2
    %p199 = scmp.ne.s32.totalorder %s194, %s196
    %p200 = scmp.eq.s32.totalorder %s24, 0
    %p201 = por %p199, %p200
    %p202 = scmp.ne.s32.totalorder %s194, %s196
    %p203 = scmp.eq.s32.totalorder %s29, 2
    %p204 = por %p202, %p203
    %p205 = scmp.ne.s32.totalorder %s196, %s197
    %p206 = scmp.eq.s32.totalorder %s29, 0
    %p207 = por %p205, %p206
    %p208 = scmp.ne.s32.totalorder %s196, %s197
    %p209 = scmp.eq.s32.totalorder %s30, 2
    %p210 = por %p208, %p209
    %p212 = scmp.ne.s32.totalorder %s197, %s211
    %p213 = scmp.eq.s32.totalorder %s30, 0
    %p214 = por %p212, %p213
    %s216 = sadd.s32 %s215, 1
    %p219 = scmp.eq.s32.totalorder %s24, 2
    %p220 = scmp.ne.s32.totalorder %s215, %s217
    %p221 = scmp.eq.s32.totalorder %s24, 0
    %p222 = por %p220, %p221
    %p223 = scmp.ne.s32.totalorder %s215, %s217
    %p224 = scmp.eq.s32.totalorder %s29, 2
    %p225 = por %p223, %p224
    %p226 = scmp.ne.s32.totalorder %s217, %s218
    %p227 = scmp.eq.s32.totalorder %s29, 0
    %p228 = por %p226, %p227
    %p229 = scmp.ne.s32.totalorder %s217, %s218
    %p230 = scmp.eq.s32.totalorder %s30, 2
    %p231 = por %p229, %p230
    %p233 = scmp.ne.s32.totalorder %s218, %s232
    %p234 = scmp.eq.s32.totalorder %s30, 0
    %p235 = por %p233, %p234
    %s237 = sadd.s32 %s236, 1
    %p240 = scmp.eq.s32.totalorder %s24, 2
    %p241 = scmp.ne.s32.totalorder %s236, %s238
    %p242 = scmp.eq.s32.totalorder %s24, 0
    %p243 = por %p241, %p242
    %p244 = scmp.ne.s32.totalorder %s236, %s238
    %p245 = scmp.eq.s32.totalorder %s29, 2
    %p246 = por %p244, %p245
    %p247 = scmp.ne.s32.totalorder %s238, %s239
    %p248 = scmp.eq.s32.totalorder %s29, 0
    %p249 = por %p247, %p248
    %p250 = scmp.ne.s32.totalorder %s238, %s239
    %p251 = scmp.eq.s32.totalorder %s30, 2
    %p252 = por %p250, %p251
    %p254 = scmp.ne.s32.totalorder %s239, %s253
    %p255 = scmp.eq.s32.totalorder %s30, 0
    %p256 = por %p254, %p255
    %s258 = sadd.s32 %s257, 1
    %p261 = scmp.eq.s32.totalorder %s24, 2
    %p262 = scmp.ne.s32.totalorder %s257, %s259
    %p263 = scmp.eq.s32.totalorder %s24, 0
    %p264 = por %p262, %p263
    %p265 = scmp.ne.s32.totalorder %s257, %s259
    %p266 = scmp.eq.s32.totalorder %s29, 2
    %p267 = por %p265, %p266
    %p268 = scmp.ne.s32.totalorder %s259, %s260
    %p269 = scmp.eq.s32.totalorder %s29, 0
    %p270 = por %p268, %p269
    %p271 = scmp.ne.s32.totalorder %s259, %s260
    %p272 = scmp.eq.s32.totalorder %s30, 2
    %p273 = por %p271, %p272
    %p275 = scmp.ne.s32.totalorder %s260, %s274
    %p276 = scmp.eq.s32.totalorder %s30, 0
    %p277 = por %p275, %p276
    %s279 = sadd.s32 %s278, 1
    %p282 = scmp.eq.s32.totalorder %s24, 2
    %p283 = scmp.ne.s32.totalorder %s278, %s280
    %p284 = scmp.eq.s32.totalorder %s24, 0
    %p285 = por %p283, %p284
    %p286 = scmp.ne.s32.totalorder %s278, %s280
    %p287 = scmp.eq.s32.totalorder %s29, 2
    %p288 = por %p286, %p287
    %p289 = scmp.ne.s32.totalorder %s280, %s281
    %p290 = scmp.eq.s32.totalorder %s29, 0
    %p291 = por %p289, %p290
    %p292 = scmp.ne.s32.totalorder %s280, %s281
    %p293 = scmp.eq.s32.totalorder %s30, 2
    %p294 = por %p292, %p293
    %p296 = scmp.ne.s32.totalorder %s281, %s295
    %p297 = scmp.eq.s32.totalorder %s30, 0
    %p298 = por %p296, %p297
    %s300 = sadd.s32 %s299, 1
    %p303 = scmp.eq.s32.totalorder %s24, 2
    %p304 = scmp.ne.s32.totalorder %s299, %s301
    %p305 = scmp.eq.s32.totalorder %s24, 0
    %p306 = por %p304, %p305
    %p307 = scmp.ne.s32.totalorder %s299, %s301
    %p308 = scmp.eq.s32.totalorder %s29, 2
    %p309 = por %p307, %p308
    %p310 = scmp.ne.s32.totalorder %s301, %s302
    %p311 = scmp.eq.s32.totalorder %s29, 0
    %p312 = por %p310, %p311
    %p313 = scmp.ne.s32.totalorder %s301, %s302
    %p314 = scmp.eq.s32.totalorder %s30, 2
    %p315 = por %p313, %p314
    %p317 = scmp.ne.s32.totalorder %s302, %s316
    %p318 = scmp.eq.s32.totalorder %s30, 0
    %p319 = por %p317, %p318
    %s321 = sadd.s32 %s320, 1
    %p324 = scmp.eq.s32.totalorder %s24, 2
    %p325 = scmp.ne.s32.totalorder %s320, %s322
    %p326 = scmp.eq.s32.totalorder %s24, 0
    %p327 = por %p325, %p326
    %p328 = scmp.ne.s32.totalorder %s320, %s322
    %p329 = scmp.eq.s32.totalorder %s29, 2
    %p330 = por %p328, %p329
    %p331 = scmp.ne.s32.totalorder %s322, %s323
    %p332 = scmp.eq.s32.totalorder %s29, 0
    %p333 = por %p331, %p332
    %p334 = scmp.ne.s32.totalorder %s322, %s323
    %p335 = scmp.eq.s32.totalorder %s30, 2
    %p336 = por %p334, %p335
    %p338 = scmp.ne.s32.totalorder %s323, %s337
    %p339 = scmp.eq.s32.totalorder %s30, 0
    %p340 = por %p338, %p339
    %s342 = sadd.s32 %s341, 1
    %p345 = scmp.eq.s32.totalorder %s24, 2
    %p346 = scmp.ne.s32.totalorder %s341, %s343
    %p347 = scmp.eq.s32.totalorder %s24, 0
    %p348 = por %p346, %p347
    %p349 = scmp.ne.s32.totalorder %s341, %s343
    %p350 = scmp.eq.s32.totalorder %s29, 2
    %p351 = por %p349, %p350
    %p352 = scmp.ne.s32.totalorder %s343, %s344
    %p353 = scmp.eq.s32.totalorder %s29, 0
    %p354 = por %p352, %p353
    %p355 = scmp.ne.s32.totalorder %s343, %s344
    %p356 = scmp.eq.s32.totalorder %s30, 2
    %p357 = por %p355, %p356
    %p359 = scmp.ne.s32.totalorder %s344, %s358
    %p360 = scmp.eq.s32.totalorder %s30, 0
    %p361 = por %p359, %p360
    %s362 = ssub.s32 %s24, %s31
    %p363 = scmp.eq.s32.totalorder %s362, 0
    %s365 = sadd.s32 %s364, 1
    %s366 = scalar_select %p363, %s364, %s365
    %p369 = pneg %p363
    %p370 = scmp.eq.s32.totalorder %s24, 2
    %p371 = por %p369, %p370
    %p372 = scmp.ne.s32.totalorder %s364, %s367
    %p373 = scmp.eq.s32.totalorder %s24, 0
    %p374 = por %p372, %p373
    %p375 = scmp.ne.s32.totalorder %s364, %s367
    %p376 = scmp.eq.s32.totalorder %s29, 2
    %p377 = por %p375, %p376
    %p378 = scmp.ne.s32.totalorder %s367, %s368
    %p379 = scmp.eq.s32.totalorder %s29, 0
    %p380 = por %p378, %p379
    %p381 = scmp.ne.s32.totalorder %s367, %s368
    %p382 = scmp.eq.s32.totalorder %s30, 2
    %p383 = por %p381, %p382
    %p385 = scmp.ne.s32.totalorder %s368, %s384
    %p386 = scmp.eq.s32.totalorder %s30, 0
    %p387 = por %p385, %p386
    %s388 = ssub.s32 %s24, %s31
    %p389 = scmp.eq.s32.totalorder %s388, 0
    %s391 = sadd.s32 %s390, 1
    %s392 = scalar_select %p389, %s390, %s391
    %p395 = pneg %p389
    %p396 = scmp.eq.s32.totalorder %s24, 2
    %p397 = por %p395, %p396
    %p398 = scmp.ne.s32.totalorder %s390, %s393
    %p399 = scmp.eq.s32.totalorder %s24, 0
    %p400 = por %p398, %p399
    %p401 = scmp.ne.s32.totalorder %s390, %s393
    %p402 = scmp.eq.s32.totalorder %s29, 2
    %p403 = por %p401, %p402
    %p404 = scmp.ne.s32.totalorder %s393, %s394
    %p405 = scmp.eq.s32.totalorder %s29, 0
    %p406 = por %p404, %p405
    %p407 = scmp.ne.s32.totalorder %s393, %s394
    %p408 = scmp.eq.s32.totalorder %s30, 2
    %p409 = por %p407, %p408
    %p411 = scmp.ne.s32.totalorder %s394, %s410
    %p412 = scmp.eq.s32.totalorder %s30, 0
    %p413 = por %p411, %p412
    %s414 = ssub.s32 %s24, %s31
    %p415 = scmp.eq.s32.totalorder %s414, 0
    %s417 = sadd.s32 %s416, 1
    %s418 = scalar_select %p415, %s416, %s417
    %p421 = pneg %p415
    %p422 = scmp.eq.s32.totalorder %s24, 2
    %p423 = por %p421, %p422
    %p424 = scmp.ne.s32.totalorder %s416, %s419
    %p425 = scmp.eq.s32.totalorder %s24, 0
    %p426 = por %p424, %p425
    %p427 = scmp.ne.s32.totalorder %s416, %s419
    %p428 = scmp.eq.s32.totalorder %s29, 2
    %p429 = por %p427, %p428
    %p430 = scmp.ne.s32.totalorder %s419, %s420
    %p431 = scmp.eq.s32.totalorder %s29, 0
    %p432 = por %p430, %p431
    %p433 = scmp.ne.s32.totalorder %s419, %s420
    %p434 = scmp.eq.s32.totalorder %s30, 2
    %p435 = por %p433, %p434
    %p437 = scmp.ne.s32.totalorder %s420, %s436
    %p438 = scmp.eq.s32.totalorder %s30, 0
    %p439 = por %p437, %p438
    %p440 = scmp.le.s32.totalorder 1, %s24
    %p441 = scmp.lt.s32.totalorder %s24, 4
    %p442 = pnand %p440, %p441
    %p443 = pneg %p442
    // Predicated region
    $region9: #{conditional_vae_forward.1} parent=5 // pred_check
      _
    $region10: #{conditional_vae_forward.1} parent=5 // pred_check_branch
      %445 = sbr.rel (%p442) target = $region12
    $region11: #{conditional_vae_forward.1} parent=5 // pred_region
      %s446 = ssub.s32 %s24, 1
      // Predicated region
      $region13: #{conditional_vae_forward.1} parent=11 // pred_check
        %p447 = pneg %p123
      $region14: #{conditional_vae_forward.1} parent=11 // pred_check_branch
        %449 = sbr.rel (%p447) target = $region16
      $region15: #{conditional_vae_forward.1} parent=11 // pred_region
        _
      $region16: #{conditional_vae_forward.1} parent=11 // pred_fallthru
        _
      // Predicated region
      $region17: #{conditional_vae_forward.1} parent=11 // pred_check
        %p450 = pneg %p144
      $region18: #{conditional_vae_forward.1} parent=11 // pred_check_branch
        %452 = sbr.rel (%p450) target = $region20
      $region19: #{conditional_vae_forward.1} parent=11 // pred_region
        _
      $region20: #{conditional_vae_forward.1} parent=11 // pred_fallthru
        _
      // Predicated region
      $region21: #{conditional_vae_forward.1} parent=11 // pred_check
        %p453 = pneg %p165
      $region22: #{conditional_vae_forward.1} parent=11 // pred_check_branch
        %455 = sbr.rel (%p453) target = $region24
      $region23: #{conditional_vae_forward.1} parent=11 // pred_region
        _
      $region24: #{conditional_vae_forward.1} parent=11 // pred_fallthru
        _
      // Predicated region
      $region25: #{conditional_vae_forward.1} parent=11 // pred_check
        %p456 = pneg %p186
      $region26: #{conditional_vae_forward.1} parent=11 // pred_check_branch
        %458 = sbr.rel (%p456) target = $region28
      $region27: #{conditional_vae_forward.1} parent=11 // pred_region
        _
      $region28: #{conditional_vae_forward.1} parent=11 // pred_fallthru
        _
      // Predicated region
      $region29: #{conditional_vae_forward.1} parent=11 // pred_check
        %p459 = pneg %p207
      $region30: #{conditional_vae_forward.1} parent=11 // pred_check_branch
        %461 = sbr.rel (%p459) target = $region32
      $region31: #{conditional_vae_forward.1} parent=11 // pred_region
        _
      $region32: #{conditional_vae_forward.1} parent=11 // pred_fallthru
        _
      // Predicated region
      $region33: #{conditional_vae_forward.1} parent=11 // pred_check
        %p462 = pneg %p228
      $region34: #{conditional_vae_forward.1} parent=11 // pred_check_branch
        %464 = sbr.rel (%p462) target = $region36
      $region35: #{conditional_vae_forward.1} parent=11 // pred_region
        _
      $region36: #{conditional_vae_forward.1} parent=11 // pred_fallthru
        _
      // Predicated region
      $region37: #{conditional_vae_forward.1} parent=11 // pred_check
        %p465 = pneg %p249
      $region38: #{conditional_vae_forward.1} parent=11 // pred_check_branch
        %467 = sbr.rel (%p465) target = $region40
      $region39: #{conditional_vae_forward.1} parent=11 // pred_region
        _
      $region40: #{conditional_vae_forward.1} parent=11 // pred_fallthru
        _
      // Predicated region
      $region41: #{conditional_vae_forward.1} parent=11 // pred_check
        %p468 = pneg %p270
      $region42: #{conditional_vae_forward.1} parent=11 // pred_check_branch
        %470 = sbr.rel (%p468) target = $region44
      $region43: #{conditional_vae_forward.1} parent=11 // pred_region
        _
      $region44: #{conditional_vae_forward.1} parent=11 // pred_fallthru
        _
      // Predicated region
      $region45: #{conditional_vae_forward.1} parent=11 // pred_check
        %p471 = pneg %p291
      $region46: #{conditional_vae_forward.1} parent=11 // pred_check_branch
        %473 = sbr.rel (%p471) target = $region48
      $region47: #{conditional_vae_forward.1} parent=11 // pred_region
        _
      $region48: #{conditional_vae_forward.1} parent=11 // pred_fallthru
        _
      // Predicated region
      $region49: #{conditional_vae_forward.1} parent=11 // pred_check
        %p474 = pneg %p312
      $region50: #{conditional_vae_forward.1} parent=11 // pred_check_branch
        %476 = sbr.rel (%p474) target = $region52
      $region51: #{conditional_vae_forward.1} parent=11 // pred_region
        _
      $region52: #{conditional_vae_forward.1} parent=11 // pred_fallthru
        _
      // Predicated region
      $region53: #{conditional_vae_forward.1} parent=11 // pred_check
        %p477 = pneg %p333
      $region54: #{conditional_vae_forward.1} parent=11 // pred_check_branch
        %479 = sbr.rel (%p477) target = $region56
      $region55: #{conditional_vae_forward.1} parent=11 // pred_region
        _
      $region56: #{conditional_vae_forward.1} parent=11 // pred_fallthru
        _
      // Predicated region
      $region57: #{conditional_vae_forward.1} parent=11 // pred_check
        %p480 = pneg %p354
      $region58: #{conditional_vae_forward.1} parent=11 // pred_check_branch
        %482 = sbr.rel (%p480) target = $region60
      $region59: #{conditional_vae_forward.1} parent=11 // pred_region
        _
      $region60: #{conditional_vae_forward.1} parent=11 // pred_fallthru
        _
    $region12: #{conditional_vae_forward.1} parent=5 // pred_fallthru
      _
    %p483 = scmp.lt.s32.totalorder %s24, 3
    // Predicated region
    $region61: #{conditional_vae_forward.1} parent=5 // pred_check
      %p484 = pneg %p483
    $region62: #{conditional_vae_forward.1} parent=5 // pred_check_branch
      %486 = sbr.rel (%p484) target = $region64
    $region63: #{conditional_vae_forward.1} parent=5 // pred_region
      // Predicated region
      $region65: #{conditional_vae_forward.1} parent=63 // pred_check
        %p487 = pneg %p44
      $region66: #{conditional_vae_forward.1} parent=63 // pred_check_branch
        %489 = sbr.rel (%p487) target = $region68
      $region67: #{conditional_vae_forward.1} parent=63 // pred_region
        %p490 = scmp.lt.s32.totalorder %s24, 2
        %s491 = scalar_select %p490, %s24, 2
        %s492 = smul.addr %s491, 8
        %s493 = scalar_lea.vmem %s0, %s492
      $region68: #{conditional_vae_forward.1} parent=63 // pred_fallthru
        _
      // Predicated region
      $region69: #{conditional_vae_forward.1} parent=63 // pred_check
        %p494 = pneg %p70
      $region70: #{conditional_vae_forward.1} parent=63 // pred_check_branch
        %496 = sbr.rel (%p494) target = $region72
      $region71: #{conditional_vae_forward.1} parent=63 // pred_region
        %p497 = scmp.lt.s32.totalorder %s24, 2
        %s498 = scalar_select %p497, %s24, 2
        %s499 = smul.addr %s498, 8
        %s500 = scalar_lea.vmem %s1, %s499
      $region72: #{conditional_vae_forward.1} parent=63 // pred_fallthru
        _
      // Predicated region
      $region73: #{conditional_vae_forward.1} parent=63 // pred_check
        %p501 = pneg %p96
      $region74: #{conditional_vae_forward.1} parent=63 // pred_check_branch
        %503 = sbr.rel (%p501) target = $region76
      $region75: #{conditional_vae_forward.1} parent=63 // pred_region
        %p504 = scmp.lt.s32.totalorder %s24, 2
        %s505 = scalar_select %p504, %s24, 2
        %s506 = smul.addr %s505, 8
        %s507 = scalar_lea.vmem %s2, %s506
      $region76: #{conditional_vae_forward.1} parent=63 // pred_fallthru
        _
    $region64: #{conditional_vae_forward.1} parent=5 // pred_fallthru
      _
    %p508 = scmp.le.s32.totalorder 1, %s24
    %p509 = scmp.lt.s32.totalorder %s24, 4
    %p510 = pnand %p508, %p509
    %p511 = pneg %p510
    // Predicated region
    $region77: #{conditional_vae_forward.1} parent=5 // pred_check
      _
    $region78: #{conditional_vae_forward.1} parent=5 // pred_check_branch
      %513 = sbr.rel (%p510) target = $region80
    $region79: #{conditional_vae_forward.1} parent=5 // pred_region
      %s514 = ssub.s32 %s24, 1
      %p515 = scmp.lt.s32.totalorder %s29, 2
      %s516 = scalar_select %p515, %s29, 2
      %s517 = smul.addr %s516, 8
      %s518 = scalar_lea.vmem %s0, %s517
      %p519 = pneg %p50
      %p520 = pneg %p47
      %p521 = scmp.lt.s32.totalorder %s29, 2
      %s522 = scalar_select %p521, %s29, 2
      %s523 = smul.addr %s522, 8
      %s524 = scalar_lea.vmem %s1, %s523
      %p525 = pneg %p76
      %p526 = pneg %p73
      %p527 = scmp.lt.s32.totalorder %s29, 2
      %s528 = scalar_select %p527, %s29, 2
      %s529 = smul.addr %s528, 8
      %s530 = scalar_lea.vmem %s2, %s529
      %p531 = pneg %p102
      %p532 = pneg %p99
      %p533 = pneg %p123
      %p534 = pneg %p120
      %p535 = pneg %p144
      %p536 = pneg %p141
      %p537 = pneg %p165
      %p538 = pneg %p162
      %p539 = pneg %p186
      %p540 = pneg %p183
      %p541 = pneg %p207
      %p542 = pneg %p204
      %p543 = pneg %p228
      %p544 = pneg %p225
      %p545 = pneg %p249
      %p546 = pneg %p246
      %p547 = pneg %p270
      %p548 = pneg %p267
      %p549 = pneg %p291
      %p550 = pneg %p288
      %p551 = pneg %p312
      %p552 = pneg %p309
      %p553 = pneg %p333
      %p554 = pneg %p330
      %p555 = pneg %p354
      %p556 = pneg %p351
      %p557 = pneg %p380
      %p558 = pneg %p377
      %p559 = scmp.lt.s32.totalorder %s29, 2
      %s560 = scalar_select %p559, %s29, 2
      %s561 = smul.addr %s560, 8
      %s562 = scalar_lea.vmem %s15, %s561
      %p563 = pneg %p406
      %p564 = pneg %p403
      %p565 = scmp.lt.s32.totalorder %s29, 2
      %s566 = scalar_select %p565, %s29, 2
      %s567 = smul.addr %s566, 8
      %s568 = scalar_lea.vmem %s16, %s567
      %p569 = pneg %p432
      %p570 = pneg %p429
      %p571 = scmp.lt.s32.totalorder %s29, 2
      %s572 = scalar_select %p571, %s29, 2
      %s573 = smul.addr %s572, 8
      %s574 = scalar_lea.vmem %s17, %s573
      %p575 = scmp.lt.s32.totalorder %s29, 2
      %s576 = scalar_select %p575, %s29, 2
      %s577 = smul.addr %s576, 8
      %s578 = scalar_lea.vmem %s0, %s577
      %p579 = scmp.lt.s32.totalorder %s29, 2
      %s580 = scalar_select %p579, %s29, 2
      %s581 = smul.addr %s580, 8
      %s582 = scalar_lea.vmem %s1, %s581
      %p583 = scmp.lt.s32.totalorder %s29, 2
      %s584 = scalar_select %p583, %s29, 2
      %s585 = smul.addr %s584, 8
      %s586 = scalar_lea.vmem %s2, %s585
      %p587 = scmp.lt.s32.totalorder %s29, 2
      %s588 = scalar_select %p587, %s29, 2
      %s589 = smul.addr %s588, 8
      %s590 = scalar_lea.vmem %s15, %s589
      %p591 = scmp.lt.s32.totalorder %s29, 2
      %s592 = scalar_select %p591, %s29, 2
      %s593 = smul.addr %s592, 8
      %s594 = scalar_lea.vmem %s16, %s593
      %p595 = scmp.lt.s32.totalorder %s29, 2
      %s596 = scalar_select %p595, %s29, 2
      %s597 = smul.addr %s596, 8
      %s598 = scalar_lea.vmem %s17, %s597
      %v600 = vld [vmem:[%s578] sm:$0xff]
      %v601 = vpack.c.bf16 %v600, %v600
      %v602 = vld [vmem:[%s582] sm:$0xff]
      %v603 = vld [vmem:[%s586] sm:$0xff]
      %v604 = vld [vmem:[%s3] sm:$0xf]
      %v605 = vld [vmem:[%s3 + $0x4] sm:$0xf]
      %v606 = vld [vmem:[%s4] sm:$0x1]
      %608 = vset.pattern.permute.xlu0 0
      %609 = vperm.xlu0 %608, %v602
      %v610 = vpop.permute.xlu0 %609
      %v613 = vperm.slane %v606, 0
      %v615 = vmul.f32 %v610, %v613
      %v618 = vunpack.c.l.b16 %v604
      %v619 = vunpack.c.l.b16 %v605
      %v620 = vpack.c.b16 %v619, %v618
      %vm622 = vcmask 130048
      %v624 = vsel %vm622, %v601, 0
      %626 = vmatpush.bf16.msra.mxu0 0
      %627 = vmatpush.bf16.msra.mxu0 0
      %628 = vmatpush.bf16.msra.mxu0 0
      %629 = vmatpush.bf16.msra.mxu0 0
      %630 = vmatpush.bf16.msra.mxu0 0
      %631 = vmatpush.bf16.msra.mxu0 0
      %632 = vmatpush.bf16.msra.mxu0 0
      %633 = vmatpush.bf16.msra.mxu0 %v620
      %634 = vmatmul.bf16.gmra.mxu0 %v624
      %v635 = vpop.f32.mrf.mxu0
      %v636 = vadd.f32 %v615, %v635
      %v637 = vpop.f32.mrf.mxu0
      %638 = vdwg.mxu0
      %v639 = vld [vmem:[%s5] sm:$0x1]
      %v641 = vperm.slane %v639, 0
      %v643 = vadd.f32 %v636, %v641
      %v644 = vmax.f32 %v643, 0.0
      %v645 = vpack.c.bf16 %v644, %v644
      %v646 = vld [vmem:[%s6] sm:$0xf]
      %v647 = vld [vmem:[%s6 + $0x4] sm:$0xf]
      %v648 = vld [vmem:[%s6 + $0x8] sm:$0xf]
      %v649 = vld [vmem:[%s6 + $0xc] sm:$0xf]
      %v650 = vld [vmem:[%s7] sm:$0x1]
      %v652 = vperm.slane %v650, 0
      %v658 = vunpack.c.l.b16 %v646
      %v659 = vunpack.c.l.b16 %v647
      %v660 = vunpack.c.l.b16 %v648
      %v661 = vunpack.c.l.b16 %v649
      %v662 = vpack.c.b16 %v659, %v658
      %v663 = vpack.c.b16 %v661, %v660
      %vm666 = vcmask 261120
      %v668 = vsel %vm666, %v645, 0
      %670 = vmatpush.bf16.msra.mxu0 0
      %671 = vmatpush.bf16.msra.mxu0 0
      %672 = vmatpush.bf16.msra.mxu0 0
      %673 = vmatpush.bf16.msra.mxu0 0
      %674 = vmatpush.bf16.msra.mxu0 0
      %675 = vmatpush.bf16.msra.mxu0 0
      %676 = vmatpush.bf16.msra.mxu0 %v663
      %677 = vmatpush.bf16.msra.mxu0 %v662
      %678 = vmatmul.bf16.gmra.mxu0 %v668
      %v679 = vpop.f32.mrf.mxu0
      %v680 = vadd.f32 %v652, %v679
      %v681 = vpop.f32.mrf.mxu0
      %682 = vdwg.mxu0
      %v683 = vld [vmem:[%s8] sm:$0xf]
      %v684 = vld [vmem:[%s8 + $0x4] sm:$0xf]
      %v685 = vld [vmem:[%s8 + $0x8] sm:$0xf]
      %v686 = vld [vmem:[%s8 + $0xc] sm:$0xf]
      %v687 = vld [vmem:[%s9] sm:$0x1]
      %v689 = vperm.slane %v687, 0
      %v695 = vunpack.c.l.b16 %v683
      %v696 = vunpack.c.l.b16 %v684
      %v697 = vunpack.c.l.b16 %v685
      %v698 = vunpack.c.l.b16 %v686
      %v699 = vpack.c.b16 %v696, %v695
      %v700 = vpack.c.b16 %v698, %v697
      %703 = vmatpush.bf16.msra.mxu0 0
      %704 = vmatpush.bf16.msra.mxu0 0
      %705 = vmatpush.bf16.msra.mxu0 0
      %706 = vmatpush.bf16.msra.mxu0 0
      %707 = vmatpush.bf16.msra.mxu0 0
      %708 = vmatpush.bf16.msra.mxu0 0
      %709 = vmatpush.bf16.msra.mxu0 %v700
      %710 = vmatpush.bf16.msra.mxu0 %v699
      %711 = vmatmul.bf16.gmra.mxu0 %v668
      %v712 = vpop.f32.mrf.mxu0
      %v713 = vadd.f32 %v689, %v712
      %v714 = vpop.f32.mrf.mxu0
      %715 = vdwg.mxu0
      %v716 = vmul.f32 %v713, 0.5
      %v717 = vmul.f32 %v716, 1.442695
      %v718 = vpow.pop %v717
      %v719 = vmul.f32 %v718, %v603
      %v720 = vadd.f32 %v680, %v719
      %v721 = vpack.c.bf16 %v720, %v720
      %v722 = vld [vmem:[%s10] sm:$0xf]
      %v723 = vld [vmem:[%s11] sm:$0x1]
      %v725 = vperm.slane %v723, 0
      %v727 = vmul.f32 %v610, %v725
      %vm728 = vcmask 64512
      %v730 = vsel %vm728, %v721, 0
      %vm732 = vcmask 1043456
      %v734 = vsel %vm732, %v722, 0
      %736 = vmatpush.bf16.msra.mxu0 0
      %737 = vmatpush.bf16.msra.mxu0 0
      %738 = vmatpush.bf16.msra.mxu0 0
      %739 = vmatpush.bf16.msra.mxu0 0
      %740 = vmatpush.bf16.msra.mxu0 0
      %741 = vmatpush.bf16.msra.mxu0 0
      %742 = vmatpush.bf16.msra.mxu0 0
      %743 = vmatpush.bf16.msra.mxu0 %v734
      %744 = vmatmul.bf16.gmra.mxu0 %v730
      %v745 = vpop.f32.mrf.mxu0
      %v746 = vadd.f32 %v727, %v745
      %v747 = vpop.f32.mrf.mxu0
      %748 = vdwg.mxu0
      %v749 = vld [vmem:[%s12] sm:$0x1]
      %v751 = vperm.slane %v749, 0
      %v753 = vadd.f32 %v746, %v751
      %v754 = vmax.f32 %v753, 0.0
      %v755 = vpack.c.bf16 %v754, %v754
      %v756 = vld [vmem:[%s13] sm:$0xf]
      %v757 = vld [vmem:[%s13 + $0x4] sm:$0xf]
      %v758 = vld [vmem:[%s13 + $0x8] sm:$0xf]
      %v759 = vld [vmem:[%s13 + $0xc] sm:$0xf]
      %v760 = vld [vmem:[%s14] sm:$0x1]
      %v762 = vperm.slane %v760, 0
      %v768 = vunpack.c.l.b16 %v756
      %v769 = vunpack.c.l.b16 %v757
      %v770 = vunpack.c.l.b16 %v758
      %v771 = vunpack.c.l.b16 %v759
      %v772 = vpack.c.b16 %v769, %v768
      %v773 = vpack.c.b16 %v771, %v770
      %v777 = vsel %vm666, %v755, 0
      %779 = vmatpush.bf16.msra.mxu0 0
      %780 = vmatpush.bf16.msra.mxu0 0
      %781 = vmatpush.bf16.msra.mxu0 0
      %782 = vmatpush.bf16.msra.mxu0 0
      %783 = vmatpush.bf16.msra.mxu0 0
      %784 = vmatpush.bf16.msra.mxu0 0
      %785 = vmatpush.bf16.msra.mxu0 %v773
      %786 = vmatpush.bf16.msra.mxu0 %v772
      %787 = vmatmul.bf16.gmra.mxu0 %v777
      %v788 = vpop.f32.mrf.mxu0
      %v789 = vadd.f32 %v762, %v788
      %v790 = vpop.f32.mrf.mxu0
      %791 = vdwg.mxu0
      %v792 = vmul.f32 %v789, 0.5
      %v793 = vtanh.pop %v792
      %v794 = vmul.f32 %v793, 0.5
      %v795 = vadd.f32 %v794, 0.5
      %796 = vst.msk [vmem:[%s590] sm:$0xff] %vm622, %v795
      %797 = vst.msk [vmem:[%s594] sm:$0xff] %vm728, %v680
      %798 = vst.msk [vmem:[%s598] sm:$0xff] %vm728, %v713
      %p799 = scmp.lt.s32.totalorder %s29, 2
      %s800 = scalar_select %p799, %s29, 2
      %s801 = smul.addr %s800, 8
      %s802 = scalar_lea.vmem %s15, %s801
      %p803 = scmp.lt.s32.totalorder %s29, 2
      %s804 = scalar_select %p803, %s29, 2
      %s805 = smul.addr %s804, 8
      %s806 = scalar_lea.vmem %s16, %s805
      %p807 = scmp.lt.s32.totalorder %s29, 2
      %s808 = scalar_select %p807, %s29, 2
      %s809 = smul.addr %s808, 8
      %s810 = scalar_lea.vmem %s17, %s809
      // Predicated region
      $region81: #{conditional_vae_forward.1} parent=79 // pred_check
        %p811 = pneg %p377
      $region82: #{conditional_vae_forward.1} parent=79 // pred_check_branch
        %813 = sbr.rel (%p811) target = $region84
      $region83: #{conditional_vae_forward.1} parent=79 // pred_region
        _
      $region84: #{conditional_vae_forward.1} parent=79 // pred_fallthru
        _
      // Predicated region
      $region85: #{conditional_vae_forward.1} parent=79 // pred_check
        %p814 = pneg %p403
      $region86: #{conditional_vae_forward.1} parent=79 // pred_check_branch
        %816 = sbr.rel (%p814) target = $region88
      $region87: #{conditional_vae_forward.1} parent=79 // pred_region
        _
      $region88: #{conditional_vae_forward.1} parent=79 // pred_fallthru
        _
      // Predicated region
      $region89: #{conditional_vae_forward.1} parent=79 // pred_check
        %p817 = pneg %p429
      $region90: #{conditional_vae_forward.1} parent=79 // pred_check_branch
        %819 = sbr.rel (%p817) target = $region92
      $region91: #{conditional_vae_forward.1} parent=79 // pred_region
        _
      $region92: #{conditional_vae_forward.1} parent=79 // pred_fallthru
        _
    $region80: #{conditional_vae_forward.1} parent=5 // pred_fallthru
      _
    %p820 = scmp.le.s32.totalorder 2, %s24
    // Predicated region
    $region93: #{conditional_vae_forward.1} parent=5 // pred_check
      %p821 = pneg %p820
    $region94: #{conditional_vae_forward.1} parent=5 // pred_check_branch
      %823 = sbr.rel (%p821) target = $region96
    $region95: #{conditional_vae_forward.1} parent=5 // pred_region
      %s824 = ssub.s32 %s24, 2
      // Predicated region
      $region97: #{conditional_vae_forward.1} parent=95 // pred_check
        %p825 = pneg %p383
      $region98: #{conditional_vae_forward.1} parent=95 // pred_check_branch
        %827 = sbr.rel (%p825) target = $region100
      $region99: #{conditional_vae_forward.1} parent=95 // pred_region
        %p828 = scmp.lt.s32.totalorder %s30, 2
        %s829 = scalar_select %p828, %s30, 2
        %s830 = smul.addr %s829, 8
        %s831 = scalar_lea.vmem %s15, %s830
      $region100: #{conditional_vae_forward.1} parent=95 // pred_fallthru
        _
      // Predicated region
      $region101: #{conditional_vae_forward.1} parent=95 // pred_check
        %p832 = pneg %p409
      $region102: #{conditional_vae_forward.1} parent=95 // pred_check_branch
        %834 = sbr.rel (%p832) target = $region104
      $region103: #{conditional_vae_forward.1} parent=95 // pred_region
        %p835 = scmp.lt.s32.totalorder %s30, 2
        %s836 = scalar_select %p835, %s30, 2
        %s837 = smul.addr %s836, 8
        %s838 = scalar_lea.vmem %s16, %s837
      $region104: #{conditional_vae_forward.1} parent=95 // pred_fallthru
        _
      // Predicated region
      $region105: #{conditional_vae_forward.1} parent=95 // pred_check
        %p839 = pneg %p435
      $region106: #{conditional_vae_forward.1} parent=95 // pred_check_branch
        %841 = sbr.rel (%p839) target = $region108
      $region107: #{conditional_vae_forward.1} parent=95 // pred_region
        %p842 = scmp.lt.s32.totalorder %s30, 2
        %s843 = scalar_select %p842, %s30, 2
        %s844 = smul.addr %s843, 8
        %s845 = scalar_lea.vmem %s17, %s844
      $region108: #{conditional_vae_forward.1} parent=95 // pred_fallthru
        _
    $region96: #{conditional_vae_forward.1} parent=5 // pred_fallthru
      _
  $region6: #{conditional_vae_forward.1} parent=0 // loop_footer
    %s28 = sadd.s32 1, %s24
  $region7: #{conditional_vae_forward.1} parent=0 // loop_footer_branch
    %23 = sbr.rel target = $region3
  $region8: #{conditional_vae_forward.1} parent=0 // loop_exit
    _

</llo_original>
